<compile_context>
chip_gen: v5e
topology: v5e:2x2
jax: 0.10.0
libtpu: 0.0.40
codegen_flags: <defaults>
</compile_context>

<pallas_src>
import math
from functools import partial

import jax
import jax.numpy as jnp
from jax.experimental import pallas as pl
from jax.experimental.pallas import tpu as pltpu


def _vmem_capacity_bytes():
    try:
        return int(pltpu.get_tpu_info().vmem_capacity_bytes)
    except Exception:
        return 64 * 1024 * 1024   # v7x per-TensorCore VMEM (smallest of v5e/v6e/v7x)


# ----------------------------------------------------------------------------
# Pallas kernel: multi-head cross-attention pooling (AudioCompressor.forward)
# Grid = (batch blocks [parallel], key tiles [arbitrary]); online softmax over
# the key tiles with f32 running (m, l, acc) scratch.
# ----------------------------------------------------------------------------
def _mha_pool_kernel(num_heads, out_len, seq_len,
                     qm_ref, hmask_ref, x_ref,
                     wkt_ref, wvt_ref, wot_ref,
                     bk_ref, bv_ref, bo_ref,
                     o_ref,
                     m_sc, l_sc, acc_sc):
    t = pl.program_id(1)
    b_blk, tT, D = x_ref.shape
    H, L = num_heads, out_len
    cdt = x_ref.dtype                      # streaming compute dtype (bf16 at real widths)

    @pl.when(t == 0)
    def _():
        m_sc[...] = jnp.full(m_sc.shape, -jnp.inf, jnp.float32)
        l_sc[...] = jnp.zeros(l_sc.shape, jnp.float32)
        acc_sc[...] = jnp.zeros(acc_sc.shape, jnp.float32)

    # K / V projections for this (batch block, key tile): one 2-D MXU matmul
    # each, f32 accumulation via preferred_element_type.
    xf = x_ref[...].reshape(b_blk * tT, D)
    k = jnp.dot(xf, wkt_ref[...], preferred_element_type=jnp.float32) + bk_ref[...]
    v = jnp.dot(xf, wvt_ref[...], preferred_element_type=jnp.float32) + bv_ref[...]
    k3 = k.reshape(b_blk, tT, D).astype(cdt)
    v3 = v.reshape(b_blk, tT, D).astype(cdt)

    # Scores for ALL heads at once against the head-masked, 1/sqrt(hd)-scaled,
    # H-times-replicated query projection [H*L, D].  Rank-2 x rank-3
    # contraction — no per-batch broadcast of qm inside the key loop.
    s = jnp.einsum('qd,btd->bqt', qm_ref[...], k3,
                   preferred_element_type=jnp.float32)            # [b, H*L, tT]

    if seq_len % tT != 0:
        # Ragged last key tile: mask out-of-range key columns and zero their
        # V rows so unspecified DMA-pad data can never reach the accumulator.
        col = t * tT + jax.lax.broadcasted_iota(jnp.int32, (1, 1, tT), 2)
        s = jnp.where(col < seq_len, s, -jnp.inf)
        row = t * tT + jax.lax.broadcasted_iota(jnp.int32, (1, tT, 1), 1)
        v3 = jnp.where(row < seq_len, v3, jnp.zeros((), v3.dtype))

    # Online softmax across the key (grid-t) axis.
    m_prev = m_sc[...]
    m_new = jnp.maximum(m_prev, jnp.max(s, axis=-1, keepdims=True))
    alpha = jnp.exp(m_prev - m_new)
    p = jnp.exp(s - m_new)
    l_sc[...] = alpha * l_sc[...] + jnp.sum(p, axis=-1, keepdims=True)
    acc_sc[...] = alpha * acc_sc[...] + jnp.einsum(
        'bqt,btd->bqd', p.astype(cdt), v3, preferred_element_type=jnp.float32)
    m_sc[...] = m_new

    @pl.when(t == pl.num_programs(1) - 1)
    def _():
        attn = acc_sc[...] * pl.reciprocal(l_sc[...], approx=True)   # [b, H*L, D]
        # Zero the cross-head feature dims and fold the head concat into a sum
        # (exact: the per-head masks are disjoint and cover all of D).
        attn = attn * hmask_ref[...][None]
        ocat = attn.reshape(b_blk, H, L, D).sum(axis=1)              # [b, L, D]
        # Natural output projection; D is already the lane axis of the output.
        y = jnp.dot(ocat.reshape(b_blk * L, D).astype(cdt), wot_ref[...],
                    preferred_element_type=jnp.float32) + bo_ref[...]
        o_ref[...] = y.reshape(b_blk, L, D).astype(o_ref.dtype)


def mha_pool_pallas(queries, x, wq, wk, wv, wo, bq, bk, bv, bo, num_heads,
                    *, b_blk=None, t_blk=None, compute_dtype=None):
    """queries: [L, D]; x: [B, T, D]; w*: [D, D] PyTorch row-major (y = x W^T + b)."""
    B, T, D = x.shape
    L = queries.shape[0]
    H = num_heads
    assert D % H == 0, "embed_dim must be divisible by num_heads"
    hd = D // H
    HL = H * L

    if compute_dtype is None:
        # MXU is natively bf16; at toy widths keep f32 for exactness.
        compute_dtype = jnp.bfloat16 if D >= 256 else jnp.float32
    itemsize = jnp.dtype(compute_dtype).itemsize

    # ---- batch-invariant precompute (plain JAX, hoisted out of the kernel) ----
    q_proj = queries.astype(jnp.float32) @ wq.astype(jnp.float32).T + bq     # [L, D]
    head_of_q = jnp.arange(HL) // L                     # row q = h*L + l  ->  h
    head_of_d = jnp.arange(D) // hd                     # feature dim -> owning head
    hmask = (head_of_q[:, None] == head_of_d[None, :]).astype(jnp.float32)  # [HL, D]
    qm = (jnp.tile(q_proj, (H, 1)) * hmask * (1.0 / math.sqrt(hd))).astype(compute_dtype)
    wkt = wk.T.astype(compute_dtype)
    wvt = wv.T.astype(compute_dtype)
    wot = wo.T.astype(compute_dtype)
    bk2 = bk.reshape(1, D).astype(jnp.float32)
    bv2 = bv.reshape(1, D).astype(jnp.float32)
    bo2 = bo.reshape(1, D).astype(jnp.float32)
    xc = x.astype(compute_dtype)

    # ---- tile selection against a VMEM budget --------------------------------
    vmem_cap = _vmem_capacity_bytes()
    budget = vmem_cap // 2                       # conservative headroom (v7x: 32 MiB)

    def vmem_est(bb, tt):
        x_tile = 2 * bb * tt * D * itemsize                          # double-buffered x
        kv = 2 * bb * tt * D * 4                                     # k/v f32
        sp = 2 * bb * HL * tt * 4                                    # scores + probs
        acc = bb * HL * (D + 8) * 4                                  # acc/m/l scratch
        outb = 2 * bb * L * D * jnp.dtype(x.dtype).itemsize
        wts = HL * D * (itemsize + 4) + 3 * D * D * itemsize + 3 * D * 4
        return x_tile + kv + sp + acc + outb + wts

    if t_blk is None:
        t_blk = T if T <= 256 else 256
        while t_blk > 128 and t_blk % 2 == 0 and vmem_est(1, t_blk) > budget:
            t_blk //= 2
    t_blk = min(t_blk, T)
    if t_blk != T:
        t_blk = max(8, (t_blk // 8) * 8)          # sublane-legal key tile

    if b_blk is None:
        # Exact divisor of B (no padded / ragged batch block, no jnp.pad of x),
        # grid >= 2 on the parallel axis when B >= 2 (v7x second TensorCore),
        # within the VMEM budget.
        cap = (B + 1) // 2 if B > 1 else 1
        b_blk = 1
        for cand in range(cap, 0, -1):
            if B % cand == 0 and vmem_est(cand, t_blk) <= budget:
                b_blk = cand
                break
    assert B % b_blk == 0, "b_blk must divide B"

    grid = (B // b_blk, pl.cdiv(T, t_blk))

    # Grid-invariant operands: whole array resident in VMEM, no per-step windowing.
    inv = pl.BlockSpec(memory_space=pltpu.MemorySpace.VMEM)

    out = pl.pallas_call(
        partial(_mha_pool_kernel, H, L, T),
        out_shape=jax.ShapeDtypeStruct((B, L, D), x.dtype),
        grid=grid,
        in_specs=[
            inv,                                                   # qm   [HL, D]
            inv,                                                   # hmask[HL, D]
            pl.BlockSpec((b_blk, t_blk, D), lambda i, t: (i, t, 0)),  # x tile
            inv,                                                   # Wk^T [D, D]
            inv,                                                   # Wv^T [D, D]
            inv,                                                   # Wo^T [D, D]
            inv,                                                   # bk   [1, D]
            inv,                                                   # bv   [1, D]
            inv,                                                   # bo   [1, D]
        ],
        out_specs=pl.BlockSpec((b_blk, L, D), lambda i, t: (i, 0, 0)),
        scratch_shapes=[
            pltpu.VMEM((b_blk, HL, 1), jnp.float32),   # running max
            pltpu.VMEM((b_blk, HL, 1), jnp.float32),   # running denominator
            pltpu.VMEM((b_blk, HL, D), jnp.float32),   # running numerator
        ],
        compiler_params=pltpu.CompilerParams(
            dimension_semantics=("parallel", "arbitrary"),
            vmem_limit_bytes=int(0.8 * vmem_cap),
        ),
    )(qm, hmask, xc, wkt, wvt, wot, bk2, bv2, bo2)
    return out


# ----------------------------------------------------------------------------
# Pure-JAX reference (nn.MultiheadAttention semantics)
# ----------------------------------------------------------------------------
def mha_pool_ref(queries, x, wq, wk, wv, wo, bq, bk, bv, bo, num_heads):
    B, T, D = x.shape
    L = queries.shape[0]
    hd = D // num_heads
    Q = queries @ wq.T + bq                                   # [L, D]
    K = jnp.einsum('btd,ed->bte', x, wk) + bk                 # [B, T, D]
    V = jnp.einsum('btd,ed->bte', x, wv) + bv
    Qh = Q.reshape(L, num_heads, hd).transpose(1, 0, 2)       # [H, L, hd]
    Kh = K.reshape(B, T, num_heads, hd).transpose(0, 2, 1, 3)
    Vh = V.reshape(B, T, num_heads, hd).transpose(0, 2, 1, 3)
    s = jnp.einsum('hld,bhtd->bhlt', Qh, Kh) / math.sqrt(hd)
    p = jax.nn.softmax(s, axis=-1)
    o = jnp.einsum('bhlt,bhtd->bhld', p, Vh)
    o = o.transpose(0, 2, 1, 3).reshape(B, L, D)
    return o @ wo.T + bo


# ----------------------------------------------------------------------------
# Module wrapper mirroring WhisperVQEncoder
# ----------------------------------------------------------------------------
class WhisperVQEncoderPallas:
    def __init__(self, hidden_size=32, target_seq_len=8, num_heads=8, key=None):
        self.hidden_size = hidden_size
        self.target_seq_len = target_seq_len
        self.num_heads = num_heads
        key = key if key is not None else jax.random.PRNGKey(0)
        ks = jax.random.split(key, 6)
        D = hidden_size
        # AudioCompressor params (deterministic synthetic init, PyTorch layout).
        self.queries = jax.random.normal(ks[0], (target_seq_len, D), jnp.float32)
        in_proj_w = 0.05 * jax.random.normal(ks[1], (3 * D, D), jnp.float32)
        in_proj_b = 0.05 * jax.random.normal(ks[2], (3 * D,), jnp.float32)
        self.wq, self.wk, self.wv = in_proj_w[:D], in_proj_w[D:2 * D], in_proj_w[2 * D:]
        self.bq, self.bk, self.bv = in_proj_b[:D], in_proj_b[D:2 * D], in_proj_b[2 * D:]
        self.wo = 0.05 * jax.random.normal(ks[3], (D, D), jnp.float32)
        self.bo = 0.05 * jax.random.normal(ks[4], (D,), jnp.float32)
        # TODO(synk): GLM WhisperVQ backbone + WhisperFeatureExtractor are external
        # pretrained checkpoints and cannot be loaded/synthesized here (mirrors the
        # whisper_model=None failure path of the reference module).
        self.whisper_model = None

    def compress(self, features, **kwargs):
        """AudioCompressor.forward — Pallas kernel path. features: [B, T, D]."""
        return mha_pool_pallas(self.queries, features,
                               self.wq, self.wk, self.wv, self.wo,
                               self.bq, self.bk, self.bv, self.bo,
                               self.num_heads, **kwargs)

    def compress_ref(self, features):
        return mha_pool_ref(self.queries, features,
                            self.wq, self.wk, self.wv, self.wo,
                            self.bq, self.bk, self.bv, self.bo,
                            self.num_heads)

    def __call__(self, audio_input):
        if audio_input.ndim == 3:
            # Matches PyTorch forward: already-extracted features returned as-is.
            return audio_input
        elif audio_input.ndim == 2:
            # Would require the external Whisper model; mirror the failure branch.
            raise ValueError("Whisper model not loaded")
        raise ValueError(f"Unsupported audio input shape: {audio_input.shape}")


if __name__ == "__main__":
    root = jax.random.PRNGKey(0)
    k1, k2, k3, k4 = jax.random.split(root, 4)

    # ---- Config A: toy widths (module-consistent small shapes), f32 ----------
    B, T, D, L, H = 2, 16, 32, 8, 8
    enc = WhisperVQEncoderPallas(hidden_size=D, target_seq_len=L, num_heads=H, key=k1)
    x = jax.random.normal(k2, (B, T, D), jnp.float32)

    y_identity = enc(x)                      # 3-D input branch: identity
    assert y_identity.shape == (B, T, D)

    y = jax.block_until_ready(enc.compress(x))
    assert y.shape == (B, L, D)
    y_ref = enc.compress_ref(x)
    err_a = float(jnp.max(jnp.abs(y - y_ref)))
    assert err_a < 2e-3, f"toy-config mismatch: {err_a}"

    # ---- Config B: T-tiled online-softmax path with a ragged key tile, f32 ----
    B2, T2, D2, L2, H2 = 3, 200, 128, 8, 8
    enc2 = WhisperVQEncoderPallas(hidden_size=D2, target_seq_len=L2, num_heads=H2, key=k3)
    x2 = jax.random.normal(k4, (B2, T2, D2), jnp.float32)
    y2_ref = enc2.compress_ref(x2)

    y2 = jax.block_until_ready(enc2.compress(x2, t_blk=128, compute_dtype=jnp.float32))
    err_b = float(jnp.max(jnp.abs(y2 - y2_ref)))
    assert err_b < 5e-3, f"tiled f32 mismatch: {err_b}"

    # ---- Config C: same shapes, bf16 streaming operands (MXU-native path) -----
    y3 = jax.block_until_ready(enc2.compress(x2, t_blk=128, compute_dtype=jnp.bfloat16))
    rel_c = float(jnp.max(jnp.abs(y3 - y2_ref)) / (jnp.max(jnp.abs(y2_ref)) + 1e-9))
    assert rel_c < 3e-2, f"tiled bf16 mismatch: {rel_c}"

    print("KERNEL_OK")
</pallas_src>

<mosaic_0001>
module attributes {stable_mosaic.version = 11 : i64} {
  func.func @_mha_pool_kernel(%arg0: i32, %arg1: i32, %arg2: memref<64x32xf32, #tpu.memory_space<vmem>>, %arg3: memref<64x32xf32, #tpu.memory_space<vmem>>, %arg4: memref<1x16x32xf32, #tpu.memory_space<vmem>>, %arg5: memref<32x32xf32, #tpu.memory_space<vmem>>, %arg6: memref<32x32xf32, #tpu.memory_space<vmem>>, %arg7: memref<32x32xf32, #tpu.memory_space<vmem>>, %arg8: memref<1x32xf32, #tpu.memory_space<vmem>>, %arg9: memref<1x32xf32, #tpu.memory_space<vmem>>, %arg10: memref<1x32xf32, #tpu.memory_space<vmem>>, %arg11: memref<1x8x32xf32, #tpu.memory_space<vmem>>, %arg12: memref<1x64x1xf32, #tpu.memory_space<vmem>>, %arg13: memref<1x64x1xf32, #tpu.memory_space<vmem>>, %arg14: memref<1x64x32xf32, #tpu.memory_space<vmem>>) attributes {dimension_semantics = [#tpu.dimension_semantics<parallel>, #tpu.dimension_semantics<arbitrary>], iteration_bounds = array<i64: 2, 1>, scalar_prefetch = 0 : i64, scratch_operands = 3 : i64, tpu.core_type = #tpu.core_type<tc>, window_params = [{pipeline_mode = #tpu.pipeline_mode<synchronous>, transform_indices = @transform_0, window_bounds = array<i64: 64, 32>}, {pipeline_mode = #tpu.pipeline_mode<synchronous>, transform_indices = @transform_1, window_bounds = array<i64: 64, 32>}, {transform_indices = @transform_2, window_bounds = array<i64: 1, 16, 32>}, {pipeline_mode = #tpu.pipeline_mode<synchronous>, transform_indices = @transform_3, window_bounds = array<i64: 32, 32>}, {pipeline_mode = #tpu.pipeline_mode<synchronous>, transform_indices = @transform_4, window_bounds = array<i64: 32, 32>}, {pipeline_mode = #tpu.pipeline_mode<synchronous>, transform_indices = @transform_5, window_bounds = array<i64: 32, 32>}, {pipeline_mode = #tpu.pipeline_mode<synchronous>, transform_indices = @transform_6, window_bounds = array<i64: 1, 32>}, {pipeline_mode = #tpu.pipeline_mode<synchronous>, transform_indices = @transform_7, window_bounds = array<i64: 1, 32>}, {pipeline_mode = #tpu.pipeline_mode<synchronous>, transform_indices = @transform_8, window_bounds = array<i64: 1, 32>}, {transform_indices = @transform_9, window_bounds = array<i64: 1, 8, 32>}]} {
    %c0_i32 = arith.constant 0 : i32
    %0 = arith.cmpi eq, %arg1, %c0_i32 : i32
    %1 = arith.extui %0 : i1 to i32
    %c0_i32_0 = arith.constant 0 : i32
    %2 = arith.cmpi ne, %1, %c0_i32_0 : i32
    scf.if %2 {
      %cst_38 = arith.constant 0xFF800000 : f32
      %45 = vector.broadcast %cst_38 : f32 to vector<1x64x1xf32>
      %c0_39 = arith.constant 0 : index
      %c0_40 = arith.constant 0 : index
      %c0_41 = arith.constant 0 : index
      %46 = vector.load %arg12[%c0_39, %c0_40, %c0_41] : memref<1x64x1xf32, #tpu.memory_space<vmem>>, vector<1x64x1xf32>
      tpu.vector_store %arg12[%c0_39, %c0_40, %c0_41], %45 {strides = array<i32>} : memref<1x64x1xf32, #tpu.memory_space<vmem>>, vector<1x64x1xf32>,
      %cst_42 = arith.constant 0.000000e+00 : f32
      %47 = vector.broadcast %cst_42 : f32 to vector<1x64x1xf32>
      %c0_43 = arith.constant 0 : index
      %c0_44 = arith.constant 0 : index
      %c0_45 = arith.constant 0 : index
      %48 = vector.load %arg13[%c0_43, %c0_44, %c0_45] : memref<1x64x1xf32, #tpu.memory_space<vmem>>, vector<1x64x1xf32>
      tpu.vector_store %arg13[%c0_43, %c0_44, %c0_45], %47 {strides = array<i32>} : memref<1x64x1xf32, #tpu.memory_space<vmem>>, vector<1x64x1xf32>,
      %cst_46 = arith.constant 0.000000e+00 : f32
      %49 = vector.broadcast %cst_46 : f32 to vector<1x64x32xf32>
      %c0_47 = arith.constant 0 : index
      %c0_48 = arith.constant 0 : index
      %c0_49 = arith.constant 0 : index
      %50 = vector.load %arg14[%c0_47, %c0_48, %c0_49] : memref<1x64x32xf32, #tpu.memory_space<vmem>>, vector<1x64x32xf32>
      tpu.vector_store %arg14[%c0_47, %c0_48, %c0_49], %49 {strides = array<i32>} : memref<1x64x32xf32, #tpu.memory_space<vmem>>, vector<1x64x32xf32>,
    } else {
    }
    %c0 = arith.constant 0 : index
    %c0_1 = arith.constant 0 : index
    %c0_2 = arith.constant 0 : index
    %3 = vector.load %arg4[%c0, %c0_1, %c0_2] : memref<1x16x32xf32, #tpu.memory_space<vmem>>, vector<1x16x32xf32>
    %4 = vector.shape_cast %3 : vector<1x16x32xf32> to vector<16x32xf32>
    %c0_3 = arith.constant 0 : index
    %c0_4 = arith.constant 0 : index
    %5 = vector.load %arg5[%c0_3, %c0_4] : memref<32x32xf32, #tpu.memory_space<vmem>>, vector<32x32xf32>
    %cst = arith.constant dense<0.000000e+00> : vector<16x32xf32>
    %6 = tpu.matmul %4, %5, %cst {dimension_numbers = #tpu.dot_dimension_numbers<[1], [0], [0], [1], [0, 0, 1, 1], [], []>} : vector<16x32xf32>, vector<32x32xf32>, vector<16x32xf32> -> vector<16x32xf32>
    %c0_5 = arith.constant 0 : index
    %c0_6 = arith.constant 0 : index
    %7 = vector.load %arg8[%c0_5, %c0_6] : memref<1x32xf32, #tpu.memory_space<vmem>>, vector<1x32xf32>
    %8 = vector.broadcast %7 : vector<1x32xf32> to vector<16x32xf32>
    %9 = arith.addf %6, %8 : vector<16x32xf32>
    %c0_7 = arith.constant 0 : index
    %c0_8 = arith.constant 0 : index
    %10 = vector.load %arg6[%c0_7, %c0_8] : memref<32x32xf32, #tpu.memory_space<vmem>>, vector<32x32xf32>
    %cst_9 = arith.constant dense<0.000000e+00> : vector<16x32xf32>
    %11 = tpu.matmul %4, %10, %cst_9 {dimension_numbers = #tpu.dot_dimension_numbers<[1], [0], [0], [1], [0, 0, 1, 1], [], []>} : vector<16x32xf32>, vector<32x32xf32>, vector<16x32xf32> -> vector<16x32xf32>
    %c0_10 = arith.constant 0 : index
    %c0_11 = arith.constant 0 : index
    %12 = vector.load %arg9[%c0_10, %c0_11] : memref<1x32xf32, #tpu.memory_space<vmem>>, vector<1x32xf32>
    %13 = vector.broadcast %12 : vector<1x32xf32> to vector<16x32xf32>
    %14 = arith.addf %11, %13 : vector<16x32xf32>
    %15 = vector.shape_cast %9 : vector<16x32xf32> to vector<1x16x32xf32>
    %16 = vector.shape_cast %14 : vector<16x32xf32> to vector<1x16x32xf32>
    %c0_12 = arith.constant 0 : index
    %c0_13 = arith.constant 0 : index
    %17 = vector.load %arg2[%c0_12, %c0_13] : memref<64x32xf32, #tpu.memory_space<vmem>>, vector<64x32xf32>
    "tpu.trace_start"() <{level = 10 : i32, message = "qd,btd->bqt"}> : () -> ()
    %cst_14 = arith.constant dense<0.000000e+00> : vector<1x16x64xf32>
    %18 = tpu.matmul %15, %17, %cst_14 {dimension_numbers = #tpu.dot_dimension_numbers<[2], [1], [0, 1], [0], [0, 0, 0, 1, 1, 0], [], []>} : vector<1x16x32xf32>, vector<64x32xf32>, vector<1x16x64xf32> -> vector<1x16x64xf32>
    %19 = tpu.transpose %18, [0, 2, 1] : vector<1x16x64xf32> -> vector<1x64x16xf32>
    "tpu.trace_stop"() : () -> ()
    %c0_15 = arith.constant 0 : index
    %c0_16 = arith.constant 0 : index
    %c0_17 = arith.constant 0 : index
    %20 = vector.load %arg12[%c0_15, %c0_16, %c0_17] : memref<1x64x1xf32, #tpu.memory_space<vmem>>, vector<1x64x1xf32>
    %cst_18 = arith.constant dense<0xFF800000> : vector<1x64xf32>
    %21 = vector.multi_reduction <maximumf>, %19, %cst_18 [2] : vector<1x64x16xf32> to vector<1x64xf32>
    %22 = vector.shape_cast %21 : vector<1x64xf32> to vector<1x64x1xf32>
    %23 = arith.maximumf %20, %22 : vector<1x64x1xf32>
    %24 = arith.subf %20, %23 : vector<1x64x1xf32>
    %25 = math.exp %24 : vector<1x64x1xf32>
    %26 = vector.broadcast %23 : vector<1x64x1xf32> to vector<1x64x16xf32>
    %27 = arith.subf %19, %26 : vector<1x64x16xf32>
    %28 = math.exp %27 : vector<1x64x16xf32>
    %c0_19 = arith.constant 0 : index
    %c0_20 = arith.constant 0 : index
    %c0_21 = arith.constant 0 : index
    %29 = vector.load %arg13[%c0_19, %c0_20, %c0_21] : memref<1x64x1xf32, #tpu.memory_space<vmem>>, vector<1x64x1xf32>
    %30 = arith.mulf %25, %29 : vector<1x64x1xf32>
    %cst_22 = arith.constant dense<0.000000e+00> : vector<1x64xf32>
    %31 = vector.multi_reduction <add>, %28, %cst_22 [2] : vector<1x64x16xf32> to vector<1x64xf32>
    %32 = vector.shape_cast %31 : vector<1x64xf32> to vector<1x64x1xf32>
    %33 = arith.addf %30, %32 : vector<1x64x1xf32>
    %c0_23 = arith.constant 0 : index
    %c0_24 = arith.constant 0 : index
    %c0_25 = arith.constant 0 : index
    %34 = vector.load %arg13[%c0_23, %c0_24, %c0_25] : memref<1x64x1xf32, #tpu.memory_space<vmem>>, vector<1x64x1xf32>
    tpu.vector_store %arg13[%c0_23, %c0_24, %c0_25], %33 {strides = array<i32>} : memref<1x64x1xf32, #tpu.memory_space<vmem>>, vector<1x64x1xf32>,
    %c0_26 = arith.constant 0 : index
    %c0_27 = arith.constant 0 : index
    %c0_28 = arith.constant 0 : index
    %35 = vector.load %arg14[%c0_26, %c0_27, %c0_28] : memref<1x64x32xf32, #tpu.memory_space<vmem>>, vector<1x64x32xf32>
    %36 = vector.broadcast %25 : vector<1x64x1xf32> to vector<1x64x32xf32>
    %37 = arith.mulf %36, %35 : vector<1x64x32xf32>
    "tpu.trace_start"() <{level = 10 : i32, message = "bqt,btd->bqd"}> : () -> ()
    %cst_29 = arith.constant dense<0.000000e+00> : vector<1x64x32xf32>
    %38 = tpu.matmul %28, %16, %cst_29 {dimension_numbers = #tpu.dot_dimension_numbers<[2], [1], [1], [2], [0, 0, 0, 1, 1, 2], [0], [0]>} : vector<1x64x16xf32>, vector<1x16x32xf32>, vector<1x64x32xf32> -> vector<1x64x32xf32>
    "tpu.trace_stop"() : () -> ()
    %39 = arith.addf %37, %38 : vector<1x64x32xf32>
    %c0_30 = arith.constant 0 : index
    %c0_31 = arith.constant 0 : index
    %c0_32 = arith.constant 0 : index
    %40 = vector.load %arg14[%c0_30, %c0_31, %c0_32] : memref<1x64x32xf32, #tpu.memory_space<vmem>>, vector<1x64x32xf32>
    tpu.vector_store %arg14[%c0_30, %c0_31, %c0_32], %39 {strides = array<i32>} : memref<1x64x32xf32, #tpu.memory_space<vmem>>, vector<1x64x32xf32>,
    %c0_33 = arith.constant 0 : index
    %c0_34 = arith.constant 0 : index
    %c0_35 = arith.constant 0 : index
    %41 = vector.load %arg12[%c0_33, %c0_34, %c0_35] : memref<1x64x1xf32, #tpu.memory_space<vmem>>, vector<1x64x1xf32>
    tpu.vector_store %arg12[%c0_33, %c0_34, %c0_35], %23 {strides = array<i32>} : memref<1x64x1xf32, #tpu.memory_space<vmem>>, vector<1x64x1xf32>,
    %c0_i32_36 = arith.constant 0 : i32
    %42 = arith.cmpi eq, %arg1, %c0_i32_36 : i32
    %43 = arith.extui %42 : i1 to i32
    %c0_i32_37 = arith.constant 0 : i32
    %44 = arith.cmpi ne, %43, %c0_i32_37 : i32
    scf.if %44 {
      %c0_38 = arith.constant 0 : index
      %c0_39 = arith.constant 0 : index
      %c0_40 = arith.constant 0 : index
      %45 = vector.load %arg14[%c0_38, %c0_39, %c0_40] : memref<1x64x32xf32, #tpu.memory_space<vmem>>, vector<1x64x32xf32>
      %c0_41 = arith.constant 0 : index
      %c0_42 = arith.constant 0 : index
      %c0_43 = arith.constant 0 : index
      %46 = vector.load %arg13[%c0_41, %c0_42, %c0_43] : memref<1x64x1xf32, #tpu.memory_space<vmem>>, vector<1x64x1xf32>
      %47 = tpu.reciprocal %46 {approx = true} : vector<1x64x1xf32> -> vector<1x64x1xf32>
      %48 = vector.broadcast %47 : vector<1x64x1xf32> to vector<1x64x32xf32>
      %49 = arith.mulf %45, %48 : vector<1x64x32xf32>
      %c0_44 = arith.constant 0 : index
      %c0_45 = arith.constant 0 : index
      %50 = vector.load %arg3[%c0_44, %c0_45] : memref<64x32xf32, #tpu.memory_space<vmem>>, vector<64x32xf32>
      %51 = vector.shape_cast %50 : vector<64x32xf32> to vector<1x64x32xf32>
      %52 = arith.mulf %49, %51 : vector<1x64x32xf32>
      %53 = vector.shape_cast %52 : vector<1x64x32xf32> to vector<1x8x8x32xf32>
      %cst_46 = arith.constant dense<0.000000e+00> : vector<1x8x32xf32>
      %54 = vector.multi_reduction <add>, %53, %cst_46 [1] : vector<1x8x8x32xf32> to vector<1x8x32xf32>
      %55 = vector.shape_cast %54 : vector<1x8x32xf32> to vector<8x32xf32>
      %c0_47 = arith.constant 0 : index
      %c0_48 = arith.constant 0 : index
      %56 = vector.load %arg7[%c0_47, %c0_48] : memref<32x32xf32, #tpu.memory_space<vmem>>, vector<32x32xf32>
      %cst_49 = arith.constant dense<0.000000e+00> : vector<8x32xf32>
      %57 = tpu.matmul %55, %56, %cst_49 {dimension_numbers = #tpu.dot_dimension_numbers<[1], [0], [0], [1], [0, 0, 1, 1], [], []>} : vector<8x32xf32>, vector<32x32xf32>, vector<8x32xf32> -> vector<8x32xf32>
      %c0_50 = arith.constant 0 : index
      %c0_51 = arith.constant 0 : index
      %58 = vector.load %arg10[%c0_50, %c0_51] : memref<1x32xf32, #tpu.memory_space<vmem>>, vector<1x32xf32>
      %59 = vector.broadcast %58 : vector<1x32xf32> to vector<8x32xf32>
      %60 = arith.addf %57, %59 : vector<8x32xf32>
      %61 = vector.shape_cast %60 : vector<8x32xf32> to vector<1x8x32xf32>
      %c0_52 = arith.constant 0 : index
      %c0_53 = arith.constant 0 : index
      %c0_54 = arith.constant 0 : index
      %62 = vector.load %arg11[%c0_52, %c0_53, %c0_54] : memref<1x8x32xf32, #tpu.memory_space<vmem>>, vector<1x8x32xf32>
      tpu.vector_store %arg11[%c0_52, %c0_53, %c0_54], %61 {strides = array<i32>} : memref<1x8x32xf32, #tpu.memory_space<vmem>>, vector<1x8x32xf32>,
    } else {
    }
    return
  }
  func.func @transform_0(%arg0: i32, %arg1: i32) -> (i32, i32) {
    %c0_i32 = arith.constant 0 : i32
    %c0_i32_0 = arith.constant 0 : i32
    %c0_i32_1 = arith.constant 0 : i32
    return %c0_i32, %c0_i32_0 : i32, i32
  }
  func.func @transform_1(%arg0: i32, %arg1: i32) -> (i32, i32) {
    %c0_i32 = arith.constant 0 : i32
    %c0_i32_0 = arith.constant 0 : i32
    %c0_i32_1 = arith.constant 0 : i32
    return %c0_i32, %c0_i32_0 : i32, i32
  }
  func.func @transform_2(%arg0: i32, %arg1: i32) -> (i32, i32, i32) {
    %c0_i32 = arith.constant 0 : i32
    %c0_i32_0 = arith.constant 0 : i32
    return %arg0, %arg1, %c0_i32 : i32, i32, i32
  }
  func.func @transform_3(%arg0: i32, %arg1: i32) -> (i32, i32) {
    %c0_i32 = arith.constant 0 : i32
    %c0_i32_0 = arith.constant 0 : i32
    %c0_i32_1 = arith.constant 0 : i32
    return %c0_i32, %c0_i32_0 : i32, i32
  }
  func.func @transform_4(%arg0: i32, %arg1: i32) -> (i32, i32) {
    %c0_i32 = arith.constant 0 : i32
    %c0_i32_0 = arith.constant 0 : i32
    %c0_i32_1 = arith.constant 0 : i32
    return %c0_i32, %c0_i32_0 : i32, i32
  }
  func.func @transform_5(%arg0: i32, %arg1: i32) -> (i32, i32) {
    %c0_i32 = arith.constant 0 : i32
    %c0_i32_0 = arith.constant 0 : i32
    %c0_i32_1 = arith.constant 0 : i32
    return %c0_i32, %c0_i32_0 : i32, i32
  }
  func.func @transform_6(%arg0: i32, %arg1: i32) -> (i32, i32) {
    %c0_i32 = arith.constant 0 : i32
    %c0_i32_0 = arith.constant 0 : i32
    %c0_i32_1 = arith.constant 0 : i32
    return %c0_i32, %c0_i32_0 : i32, i32
  }
  func.func @transform_7(%arg0: i32, %arg1: i32) -> (i32, i32) {
    %c0_i32 = arith.constant 0 : i32
    %c0_i32_0 = arith.constant 0 : i32
    %c0_i32_1 = arith.constant 0 : i32
    return %c0_i32, %c0_i32_0 : i32, i32
  }
  func.func @transform_8(%arg0: i32, %arg1: i32) -> (i32, i32) {
    %c0_i32 = arith.constant 0 : i32
    %c0_i32_0 = arith.constant 0 : i32
    %c0_i32_1 = arith.constant 0 : i32
    return %c0_i32, %c0_i32_0 : i32, i32
  }
  func.func @transform_9(%arg0: i32, %arg1: i32) -> (i32, i32, i32) {
    %c0_i32 = arith.constant 0 : i32
    %c0_i32_0 = arith.constant 0 : i32
    %c0_i32_1 = arith.constant 0 : i32
    return %arg0, %c0_i32, %c0_i32_0 : i32, i32, i32
  }
}

</mosaic_0001>

<llo_original>
// kernel: tpu_custom_call.1
$region0: #{tpu_custom_call.1}
  #allocation0 [shape = 'u32[]', space=smem, size = 0x4, offset = 0x4, fixed_abs, tag = 'smem constant byte address 0x4 - core index']
  #allocation1 [shape = 'u32[72,128]{1,0:T(1,128)}', space=vmem, size = 0x9000, scoped, tag = 'internal scratch']
  #allocation2 [shape = 'f32[1,64,1]{2,1,0:T(8,128)}', space=vmem, size = 0x8000, scoped, tag = 'scratch operand']
  #allocation3 [shape = 'f32[1,64,1]{2,1,0:T(8,128)}', space=vmem, size = 0x8000, scoped, tag = 'scratch operand']
  #allocation4 [shape = 'f32[1,64,32]{2,1,0:T(8,128)}', space=vmem, size = 0x8000, scoped, tag = 'scratch operand']
  %s0 = inlined_call_operand.vmem [shape: f32[64,32], index: 0, kind: input, shape index: {}]
  %s1 = inlined_call_operand.vmem [shape: f32[64,32], index: 1, kind: input, shape index: {}]
  %s2 = inlined_call_operand.vmem [shape: f32[2,16,32], index: 2, kind: input, shape index: {}]
  %s3 = inlined_call_operand.vmem [shape: f32[32,32], index: 3, kind: input, shape index: {}]
  %s4 = inlined_call_operand.vmem [shape: f32[32,32], index: 4, kind: input, shape index: {}]
  %s5 = inlined_call_operand.vmem [shape: f32[32,32], index: 5, kind: input, shape index: {}]
  %s6 = inlined_call_operand.vmem [shape: f32[1,32], index: 6, kind: input, shape index: {}]
  %s7 = inlined_call_operand.vmem [shape: f32[1,32], index: 7, kind: input, shape index: {}]
  %s8 = inlined_call_operand.vmem [shape: f32[1,32], index: 8, kind: input, shape index: {}]
  %s9 = inlined_call_operand.hbm [shape: f32[2,8,32], index: 9, kind: output, shape index: {}]
  %s10 = sld [smem:[#allocation0]]
  $region77: #{tpu_custom_call.1} parent=0
    _
  %s12 = ssub.s32 1, %s10
  %s13 = scalar_select 0, %s12, %s10
  $region1: #{tpu_custom_call.1} parent=0
    #allocation5 [shape = 'u8[8192]{0}', space=vmem, size = 0x2000, scoped, tag = 'output window, operand 0']
    #allocation6 [shape = 's32[2]{0}', space=sflag, size = 0x8, scoped, tag = 'scoped memory for tpu_custom_call.1']
    %14 = vsyncpa [#allocation6], 0
    %s15 = scalar_lea.sflag [#allocation6], 1
    %16 = vsyncpa %s15, 0
    loop: start=0, step=1, limit=4
    $region2: #{tpu_custom_call.1} parent=1 // loop_pre_header
      _
    $region3: #{tpu_custom_call.1} parent=1 // loop_header
      %s18 = sphi 0, %s22
      %p19 = scmp.ge.s32.totalorder %s18, 4
      %s25 = sphi 0, %s37
      %s26 = sphi 0, %s33
      %s27 = sphi 0, %s25
      %s28 = sphi 0, %s26
      %s29 = sphi 0, %s27
      %s30 = sphi 0, %s28
      %s38 = sphi 0, %s38
      %s40 = sphi 0, %s38
      %s41 = sphi 0, %s40
      %s55 = sphi 0, %s41
      %s59 = sphi 0, %s59
      %s61 = sphi 0, %s59
      %s62 = sphi 0, %s61
      %s76 = sphi 0, %s62
      %s84 = sphi 0, %s86
      %s87 = sphi 0, %s84
      %s88 = sphi 0, %s87
      %s104 = sphi 0, %s88
      %s108 = sphi 0, %s108
      %s110 = sphi 0, %s108
      %s111 = sphi 0, %s110
      %s125 = sphi 0, %s111
      %s129 = sphi 0, %s129
      %s131 = sphi 0, %s129
      %s132 = sphi 0, %s131
      %s146 = sphi 0, %s132
      %s150 = sphi 0, %s150
      %s152 = sphi 0, %s150
      %s153 = sphi 0, %s152
      %s167 = sphi 0, %s153
      %s171 = sphi 0, %s171
      %s173 = sphi 0, %s171
      %s174 = sphi 0, %s173
      %s188 = sphi 0, %s174
      %s192 = sphi 0, %s192
      %s194 = sphi 0, %s192
      %s195 = sphi 0, %s194
      %s209 = sphi 0, %s195
      %s213 = sphi 0, %s213
      %s215 = sphi 0, %s213
      %s216 = sphi 0, %s215
      %s230 = sphi 0, %s216
      %s236 = sphi 0, %s238
      %s239 = sphi 0, %s236
      %s240 = sphi 0, %s239
      %s256 = sphi 0, %s240
    $region4: #{tpu_custom_call.1} parent=1 // loop_header_branch
      %21 = sbr.rel (%p19) target = $region8
    $region5: #{tpu_custom_call.1} parent=1 // loop_body
      %s23 = ssub.s32 %s18, 1
      %s24 = ssub.s32 %s18, 2
      %s31 = sadd.s32 1, %s26
      %p32 = scmp.ge.s32.totalorder %s31, 1
      %s33 = scalar_select %p32, 0, %s31
      %s34 = sadd.s32 1, %s25
      %s35 = scalar_select %p32, %s34, %s25
      %p36 = scmp.ge.s32.totalorder %s35, 2
      %s37 = scalar_select %p36, 0, %s35
      %s39 = sadd.s32 %s38, 1
      %p42 = scmp.eq.s32.totalorder %s18, 1
      %p43 = scmp.ne.s32.totalorder %s38, %s40
      %p44 = scmp.eq.s32.totalorder %s18, 0
      %p45 = por %p43, %p44
      %p46 = scmp.ne.s32.totalorder %s38, %s40
      %p47 = scmp.eq.s32.totalorder %s23, 1
      %p48 = por %p46, %p47
      %p49 = scmp.ne.s32.totalorder %s40, %s41
      %p50 = scmp.eq.s32.totalorder %s23, 0
      %p51 = por %p49, %p50
      %p52 = scmp.ne.s32.totalorder %s40, %s41
      %p53 = scmp.eq.s32.totalorder %s24, 1
      %p54 = por %p52, %p53
      %p56 = scmp.ne.s32.totalorder %s41, %s55
      %p57 = scmp.eq.s32.totalorder %s24, 0
      %p58 = por %p56, %p57
      %s60 = sadd.s32 %s59, 1
      %p63 = scmp.eq.s32.totalorder %s18, 1
      %p64 = scmp.ne.s32.totalorder %s59, %s61
      %p65 = scmp.eq.s32.totalorder %s18, 0
      %p66 = por %p64, %p65
      %p67 = scmp.ne.s32.totalorder %s59, %s61
      %p68 = scmp.eq.s32.totalorder %s23, 1
      %p69 = por %p67, %p68
      %p70 = scmp.ne.s32.totalorder %s61, %s62
      %p71 = scmp.eq.s32.totalorder %s23, 0
      %p72 = por %p70, %p71
      %p73 = scmp.ne.s32.totalorder %s61, %s62
      %p74 = scmp.eq.s32.totalorder %s24, 1
      %p75 = por %p73, %p74
      %p77 = scmp.ne.s32.totalorder %s62, %s76
      %p78 = scmp.eq.s32.totalorder %s24, 0
      %p79 = por %p77, %p78
      %s80 = ssub.s32 %s25, %s37
      %s81 = ssub.s32 %s26, %s33
      %s82 = sor.u32 %s80, %s81
      %p83 = scmp.eq.s32.totalorder %s82, 0
      %s85 = sadd.s32 %s84, 1
      %s86 = scalar_select %p83, %s84, %s85
      %p89 = pneg %p83
      %p90 = scmp.eq.s32.totalorder %s18, 1
      %p91 = por %p89, %p90
      %p92 = scmp.ne.s32.totalorder %s84, %s87
      %p93 = scmp.eq.s32.totalorder %s18, 0
      %p94 = por %p92, %p93
      %p95 = scmp.ne.s32.totalorder %s84, %s87
      %p96 = scmp.eq.s32.totalorder %s23, 1
      %p97 = por %p95, %p96
      %p98 = scmp.ne.s32.totalorder %s87, %s88
      %p99 = scmp.eq.s32.totalorder %s23, 0
      %p100 = por %p98, %p99
      %p101 = scmp.ne.s32.totalorder %s87, %s88
      %p102 = scmp.eq.s32.totalorder %s24, 1
      %p103 = por %p101, %p102
      %p105 = scmp.ne.s32.totalorder %s88, %s104
      %p106 = scmp.eq.s32.totalorder %s24, 0
      %p107 = por %p105, %p106
      %s109 = sadd.s32 %s108, 1
      %p112 = scmp.eq.s32.totalorder %s18, 1
      %p113 = scmp.ne.s32.totalorder %s108, %s110
      %p114 = scmp.eq.s32.totalorder %s18, 0
      %p115 = por %p113, %p114
      %p116 = scmp.ne.s32.totalorder %s108, %s110
      %p117 = scmp.eq.s32.totalorder %s23, 1
      %p118 = por %p116, %p117
      %p119 = scmp.ne.s32.totalorder %s110, %s111
      %p120 = scmp.eq.s32.totalorder %s23, 0
      %p121 = por %p119, %p120
      %p122 = scmp.ne.s32.totalorder %s110, %s111
      %p123 = scmp.eq.s32.totalorder %s24, 1
      %p124 = por %p122, %p123
      %p126 = scmp.ne.s32.totalorder %s111, %s125
      %p127 = scmp.eq.s32.totalorder %s24, 0
      %p128 = por %p126, %p127
      %s130 = sadd.s32 %s129, 1
      %p133 = scmp.eq.s32.totalorder %s18, 1
      %p134 = scmp.ne.s32.totalorder %s129, %s131
      %p135 = scmp.eq.s32.totalorder %s18, 0
      %p136 = por %p134, %p135
      %p137 = scmp.ne.s32.totalorder %s129, %s131
      %p138 = scmp.eq.s32.totalorder %s23, 1
      %p139 = por %p137, %p138
      %p140 = scmp.ne.s32.totalorder %s131, %s132
      %p141 = scmp.eq.s32.totalorder %s23, 0
      %p142 = por %p140, %p141
      %p143 = scmp.ne.s32.totalorder %s131, %s132
      %p144 = scmp.eq.s32.totalorder %s24, 1
      %p145 = por %p143, %p144
      %p147 = scmp.ne.s32.totalorder %s132, %s146
      %p148 = scmp.eq.s32.totalorder %s24, 0
      %p149 = por %p147, %p148
      %s151 = sadd.s32 %s150, 1
      %p154 = scmp.eq.s32.totalorder %s18, 1
      %p155 = scmp.ne.s32.totalorder %s150, %s152
      %p156 = scmp.eq.s32.totalorder %s18, 0
      %p157 = por %p155, %p156
      %p158 = scmp.ne.s32.totalorder %s150, %s152
      %p159 = scmp.eq.s32.totalorder %s23, 1
      %p160 = por %p158, %p159
      %p161 = scmp.ne.s32.totalorder %s152, %s153
      %p162 = scmp.eq.s32.totalorder %s23, 0
      %p163 = por %p161, %p162
      %p164 = scmp.ne.s32.totalorder %s152, %s153
      %p165 = scmp.eq.s32.totalorder %s24, 1
      %p166 = por %p164, %p165
      %p168 = scmp.ne.s32.totalorder %s153, %s167
      %p169 = scmp.eq.s32.totalorder %s24, 0
      %p170 = por %p168, %p169
      %s172 = sadd.s32 %s171, 1
      %p175 = scmp.eq.s32.totalorder %s18, 1
      %p176 = scmp.ne.s32.totalorder %s171, %s173
      %p177 = scmp.eq.s32.totalorder %s18, 0
      %p178 = por %p176, %p177
      %p179 = scmp.ne.s32.totalorder %s171, %s173
      %p180 = scmp.eq.s32.totalorder %s23, 1
      %p181 = por %p179, %p180
      %p182 = scmp.ne.s32.totalorder %s173, %s174
      %p183 = scmp.eq.s32.totalorder %s23, 0
      %p184 = por %p182, %p183
      %p185 = scmp.ne.s32.totalorder %s173, %s174
      %p186 = scmp.eq.s32.totalorder %s24, 1
      %p187 = por %p185, %p186
      %p189 = scmp.ne.s32.totalorder %s174, %s188
      %p190 = scmp.eq.s32.totalorder %s24, 0
      %p191 = por %p189, %p190
      %s193 = sadd.s32 %s192, 1
      %p196 = scmp.eq.s32.totalorder %s18, 1
      %p197 = scmp.ne.s32.totalorder %s192, %s194
      %p198 = scmp.eq.s32.totalorder %s18, 0
      %p199 = por %p197, %p198
      %p200 = scmp.ne.s32.totalorder %s192, %s194
      %p201 = scmp.eq.s32.totalorder %s23, 1
      %p202 = por %p200, %p201
      %p203 = scmp.ne.s32.totalorder %s194, %s195
      %p204 = scmp.eq.s32.totalorder %s23, 0
      %p205 = por %p203, %p204
      %p206 = scmp.ne.s32.totalorder %s194, %s195
      %p207 = scmp.eq.s32.totalorder %s24, 1
      %p208 = por %p206, %p207
      %p210 = scmp.ne.s32.totalorder %s195, %s209
      %p211 = scmp.eq.s32.totalorder %s24, 0
      %p212 = por %p210, %p211
      %s214 = sadd.s32 %s213, 1
      %p217 = scmp.eq.s32.totalorder %s18, 1
      %p218 = scmp.ne.s32.totalorder %s213, %s215
      %p219 = scmp.eq.s32.totalorder %s18, 0
      %p220 = por %p218, %p219
      %p221 = scmp.ne.s32.totalorder %s213, %s215
      %p222 = scmp.eq.s32.totalorder %s23, 1
      %p223 = por %p221, %p222
      %p224 = scmp.ne.s32.totalorder %s215, %s216
      %p225 = scmp.eq.s32.totalorder %s23, 0
      %p226 = por %p224, %p225
      %p227 = scmp.ne.s32.totalorder %s215, %s216
      %p228 = scmp.eq.s32.totalorder %s24, 1
      %p229 = por %p227, %p228
      %p231 = scmp.ne.s32.totalorder %s216, %s230
      %p232 = scmp.eq.s32.totalorder %s24, 0
      %p233 = por %p231, %p232
      %s234 = ssub.s32 %s25, %s37
      %p235 = scmp.eq.s32.totalorder %s234, 0
      %s237 = sadd.s32 %s236, 1
      %s238 = scalar_select %p235, %s236, %s237
      %p241 = pneg %p235
      %p242 = scmp.eq.s32.totalorder %s18, 1
      %p243 = por %p241, %p242
      %p244 = scmp.ne.s32.totalorder %s236, %s239
      %p245 = scmp.eq.s32.totalorder %s18, 0
      %p246 = por %p244, %p245
      %p247 = scmp.ne.s32.totalorder %s236, %s239
      %p248 = scmp.eq.s32.totalorder %s23, 1
      %p249 = por %p247, %p248
      %p250 = scmp.ne.s32.totalorder %s239, %s240
      %p251 = scmp.eq.s32.totalorder %s23, 0
      %p252 = por %p250, %p251
      %p253 = scmp.ne.s32.totalorder %s239, %s240
      %p254 = scmp.eq.s32.totalorder %s24, 1
      %p255 = por %p253, %p254
      %p257 = scmp.ne.s32.totalorder %s240, %s256
      %p258 = scmp.eq.s32.totalorder %s24, 0
      %p259 = por %p257, %p258
      %p260 = scmp.le.s32.totalorder 1, %s18
      %p261 = scmp.lt.s32.totalorder %s18, 3
      %p262 = pnand %p260, %p261
      %p263 = pneg %p262
      // Predicated region
      $region9: #{tpu_custom_call.1} parent=5 // pred_check
        _
      $region10: #{tpu_custom_call.1} parent=5 // pred_check_branch
        %265 = sbr.rel (%p262) target = $region12
      $region11: #{tpu_custom_call.1} parent=5 // pred_region
        %s266 = ssub.s32 %s18, 1
        // Predicated region
        $region13: #{tpu_custom_call.1} parent=11 // pred_check
          %p267 = pneg %p51
        $region14: #{tpu_custom_call.1} parent=11 // pred_check_branch
          %269 = sbr.rel (%p267) target = $region16
        $region15: #{tpu_custom_call.1} parent=11 // pred_region
          _
        $region16: #{tpu_custom_call.1} parent=11 // pred_fallthru
          _
        // Predicated region
        $region17: #{tpu_custom_call.1} parent=11 // pred_check
          %p270 = pneg %p72
        $region18: #{tpu_custom_call.1} parent=11 // pred_check_branch
          %272 = sbr.rel (%p270) target = $region20
        $region19: #{tpu_custom_call.1} parent=11 // pred_region
          _
        $region20: #{tpu_custom_call.1} parent=11 // pred_fallthru
          _
        // Predicated region
        $region21: #{tpu_custom_call.1} parent=11 // pred_check
          %p273 = pneg %p121
        $region22: #{tpu_custom_call.1} parent=11 // pred_check_branch
          %275 = sbr.rel (%p273) target = $region24
        $region23: #{tpu_custom_call.1} parent=11 // pred_region
          _
        $region24: #{tpu_custom_call.1} parent=11 // pred_fallthru
          _
        // Predicated region
        $region25: #{tpu_custom_call.1} parent=11 // pred_check
          %p276 = pneg %p142
        $region26: #{tpu_custom_call.1} parent=11 // pred_check_branch
          %278 = sbr.rel (%p276) target = $region28
        $region27: #{tpu_custom_call.1} parent=11 // pred_region
          _
        $region28: #{tpu_custom_call.1} parent=11 // pred_fallthru
          _
        // Predicated region
        $region29: #{tpu_custom_call.1} parent=11 // pred_check
          %p279 = pneg %p163
        $region30: #{tpu_custom_call.1} parent=11 // pred_check_branch
          %281 = sbr.rel (%p279) target = $region32
        $region31: #{tpu_custom_call.1} parent=11 // pred_region
          _
        $region32: #{tpu_custom_call.1} parent=11 // pred_fallthru
          _
        // Predicated region
        $region33: #{tpu_custom_call.1} parent=11 // pred_check
          %p282 = pneg %p184
        $region34: #{tpu_custom_call.1} parent=11 // pred_check_branch
          %284 = sbr.rel (%p282) target = $region36
        $region35: #{tpu_custom_call.1} parent=11 // pred_region
          _
        $region36: #{tpu_custom_call.1} parent=11 // pred_fallthru
          _
        // Predicated region
        $region37: #{tpu_custom_call.1} parent=11 // pred_check
          %p285 = pneg %p205
        $region38: #{tpu_custom_call.1} parent=11 // pred_check_branch
          %287 = sbr.rel (%p285) target = $region40
        $region39: #{tpu_custom_call.1} parent=11 // pred_region
          _
        $region40: #{tpu_custom_call.1} parent=11 // pred_fallthru
          _
        // Predicated region
        $region41: #{tpu_custom_call.1} parent=11 // pred_check
          %p288 = pneg %p226
        $region42: #{tpu_custom_call.1} parent=11 // pred_check_branch
          %290 = sbr.rel (%p288) target = $region44
        $region43: #{tpu_custom_call.1} parent=11 // pred_region
          _
        $region44: #{tpu_custom_call.1} parent=11 // pred_fallthru
          _
      $region12: #{tpu_custom_call.1} parent=5 // pred_fallthru
        _
      %p291 = scmp.lt.s32.totalorder %s18, 2
      // Predicated region
      $region45: #{tpu_custom_call.1} parent=5 // pred_check
        %p292 = pneg %p291
      $region46: #{tpu_custom_call.1} parent=5 // pred_check_branch
        %294 = sbr.rel (%p292) target = $region48
      $region47: #{tpu_custom_call.1} parent=5 // pred_region
        // Predicated region
        $region49: #{tpu_custom_call.1} parent=47 // pred_check
          %p295 = pneg %p94
        $region50: #{tpu_custom_call.1} parent=47 // pred_check_branch
          %297 = sbr.rel (%p295) target = $region52
        $region51: #{tpu_custom_call.1} parent=47 // pred_region
          %s298 = smul.u32 2, %s26
          %p299 = scmp.lt.s32.totalorder %s25, 1
          %s300 = scalar_select %p299, %s25, 1
          %p301 = scmp.lt.s32.totalorder %s298, 1
          %s302 = scalar_select %p301, %s298, 1
          %s303 = smul.addr %s300, 2
          %s304 = sadd.s32 %s302, %s303
          %s305 = smul.addr %s304, 8
          %s306 = scalar_lea.vmem %s2, %s305
          %s307 = smul.u32 2, %s26
        $region52: #{tpu_custom_call.1} parent=47 // pred_fallthru
          _
      $region48: #{tpu_custom_call.1} parent=5 // pred_fallthru
        _
      %p308 = scmp.le.s32.totalorder 1, %s18
      %p309 = scmp.lt.s32.totalorder %s18, 3
      %p310 = pnand %p308, %p309
      %p311 = pneg %p310
      // Predicated region
      $region53: #{tpu_custom_call.1} parent=5 // pred_check
        _
      $region54: #{tpu_custom_call.1} parent=5 // pred_check_branch
        %313 = sbr.rel (%p310) target = $region56
      $region55: #{tpu_custom_call.1} parent=5 // pred_region
        %s314 = ssub.s32 %s18, 1
        %p315 = pneg %p51
        %p316 = pneg %p48
        %p317 = pneg %p72
        %p318 = pneg %p69
        %s319 = smul.u32 2, %s28
        %p320 = scmp.lt.s32.totalorder %s27, 1
        %s321 = scalar_select %p320, %s27, 1
        %p322 = scmp.lt.s32.totalorder %s319, 1
        %s323 = scalar_select %p322, %s319, 1
        %s324 = smul.addr %s321, 2
        %s325 = sadd.s32 %s323, %s324
        %s326 = smul.addr %s325, 8
        %s327 = scalar_lea.vmem %s2, %s326
        %p328 = pneg %p100
        %p329 = pneg %p97
        %p330 = pneg %p121
        %p331 = pneg %p118
        %p332 = pneg %p142
        %p333 = pneg %p139
        %p334 = pneg %p163
        %p335 = pneg %p160
        %p336 = pneg %p184
        %p337 = pneg %p181
        %p338 = pneg %p205
        %p339 = pneg %p202
        %p340 = pneg %p226
        %p341 = pneg %p223
        %p342 = pneg %p252
        %p343 = pneg %p249
        %s344 = sand.u32 %s239, 1
        %s345 = scalar_lea.sflag [#allocation6], %s344
        %s346 = sand.u32 %s239, 1
        %s347 = smul.addr %s346, 8
        %s348 = scalar_lea.vmem [#allocation5], %s347
        %s349 = smul.u32 2, %s28
        %p350 = scmp.lt.s32.totalorder %s27, 1
        %s351 = scalar_select %p350, %s27, 1
        %p352 = scmp.lt.s32.totalorder %s349, 1
        %s353 = scalar_select %p352, %s349, 1
        %s354 = smul.addr %s351, 2
        %s355 = sadd.s32 %s353, %s354
        %s356 = smul.addr %s355, 8
        %s357 = scalar_lea.vmem %s2, %s356
        %s358 = smul.u32 2, %s28
        %p359 = scmp.eq.s32.totalorder %s28, 0
        // Predicated region
        $region57: #{tpu_custom_call.1} parent=55 // pred_check
          %p360 = pneg %p359
        $region58: #{tpu_custom_call.1} parent=55 // pred_check_branch
          %362 = sbr.rel (%p360) target = $region60
        $region59: #{tpu_custom_call.1} parent=55 // pred_region
          %vm363 = vcmask 7168
          %364 = vst.msk [vmem:[#allocation2] sm:$0xff] %vm363, -inf
          %365 = vst.msk [vmem:[#allocation2 + $0x8] sm:$0xff] %vm363, -inf
          %366 = vst.msk [vmem:[#allocation2 + $0x10] sm:$0xff] %vm363, -inf
          %367 = vst.msk [vmem:[#allocation2 + $0x18] sm:$0xff] %vm363, -inf
          %368 = vst.msk [vmem:[#allocation2 + $0x20] sm:$0xff] %vm363, -inf
          %369 = vst.msk [vmem:[#allocation2 + $0x28] sm:$0xff] %vm363, -inf
          %370 = vst.msk [vmem:[#allocation2 + $0x30] sm:$0xff] %vm363, -inf
          %371 = vst.msk [vmem:[#allocation2 + $0x38] sm:$0xff] %vm363, -inf
          %372 = vst.msk [vmem:[#allocation3] sm:$0xff] %vm363, 0.0
          %373 = vst.msk [vmem:[#allocation3 + $0x8] sm:$0xff] %vm363, 0.0
          %374 = vst.msk [vmem:[#allocation3 + $0x10] sm:$0xff] %vm363, 0.0
          %375 = vst.msk [vmem:[#allocation3 + $0x18] sm:$0xff] %vm363, 0.0
          %376 = vst.msk [vmem:[#allocation3 + $0x20] sm:$0xff] %vm363, 0.0
          %377 = vst.msk [vmem:[#allocation3 + $0x28] sm:$0xff] %vm363, 0.0
          %378 = vst.msk [vmem:[#allocation3 + $0x30] sm:$0xff] %vm363, 0.0
          %379 = vst.msk [vmem:[#allocation3 + $0x38] sm:$0xff] %vm363, 0.0
          %vm380 = vcmask 261120
          %381 = vst.msk [vmem:[#allocation4] sm:$0xff] %vm380, 0.0
          %382 = vst.msk [vmem:[#allocation4 + $0x8] sm:$0xff] %vm380, 0.0
          %383 = vst.msk [vmem:[#allocation4 + $0x10] sm:$0xff] %vm380, 0.0
          %384 = vst.msk [vmem:[#allocation4 + $0x18] sm:$0xff] %vm380, 0.0
          %385 = vst.msk [vmem:[#allocation4 + $0x20] sm:$0xff] %vm380, 0.0
          %386 = vst.msk [vmem:[#allocation4 + $0x28] sm:$0xff] %vm380, 0.0
          %387 = vst.msk [vmem:[#allocation4 + $0x30] sm:$0xff] %vm380, 0.0
          %388 = vst.msk [vmem:[#allocation4 + $0x38] sm:$0xff] %vm380, 0.0
        $region60: #{tpu_custom_call.1} parent=55 // pred_fallthru
          _
        %v389 = vld [vmem:[%s357] sm:$0xff]
        %v390 = vld [vmem:[%s357 + $0x8] sm:$0xff]
        %v391 = vld [vmem:[%s3] sm:$0xff]
        %v392 = vld [vmem:[%s3 + $0x8] sm:$0xff]
        %v393 = vld [vmem:[%s3 + $0x10] sm:$0xff]
        %v394 = vld [vmem:[%s3 + $0x18] sm:$0xff]
        %v395 = vld [vmem:[%s6] sm:$0x1]
        %v397 = vperm.slane %v395, 0
        %vm399 = vcmask 261120
        %v401 = vsel %vm399, %v389, 0
        %v404 = vsel %vm399, %v390, 0
        %406 = vmatpush.msra.mxu0 0.0
        %407 = vmatpush.msra.mxu0 0.0
        %408 = vmatpush.msra.mxu0 0.0
        %409 = vmatpush.msra.mxu0 0.0
        %410 = vmatpush.msra.mxu0 0.0
        %411 = vmatpush.msra.mxu0 0.0
        %412 = vmatpush.msra.mxu0 0.0
        %413 = vmatpush.msra.mxu0 0.0
        %414 = vmatpush.msra.mxu0 0.0
        %415 = vmatpush.msra.mxu0 0.0
        %416 = vmatpush.msra.mxu0 0.0
        %417 = vmatpush.msra.mxu0 0.0
        %418 = vmatpush.msra.mxu0 %v394
        %419 = vmatpush.msra.mxu0 %v393
        %420 = vmatpush.msra.mxu0 %v392
        %421 = vmatpush.msra.mxu0 %v391
        %422 = vmatmul.f32.gmra.mxu0 %v401
        %v423 = vpop.f32.mrf.mxu0
        %v424 = vadd.f32 %v397, %v423
        %425 = vmatmul.f32.gmra.mxu0 %v404
        %v426 = vpop.f32.mrf.mxu0
        %v427 = vadd.f32 %v397, %v426
        %428 = vdwg.mxu0
        %v429 = vld [vmem:[%s4] sm:$0xff]
        %v430 = vld [vmem:[%s4 + $0x8] sm:$0xff]
        %v431 = vld [vmem:[%s4 + $0x10] sm:$0xff]
        %v432 = vld [vmem:[%s4 + $0x18] sm:$0xff]
        %v433 = vld [vmem:[%s7] sm:$0x1]
        %v435 = vperm.slane %v433, 0
        %437 = vmatpush.msra.mxu0 0.0
        %438 = vmatpush.msra.mxu0 0.0
        %439 = vmatpush.msra.mxu0 0.0
        %440 = vmatpush.msra.mxu0 0.0
        %441 = vmatpush.msra.mxu0 0.0
        %442 = vmatpush.msra.mxu0 0.0
        %443 = vmatpush.msra.mxu0 0.0
        %444 = vmatpush.msra.mxu0 0.0
        %445 = vmatpush.msra.mxu0 0.0
        %446 = vmatpush.msra.mxu0 0.0
        %447 = vmatpush.msra.mxu0 0.0
        %448 = vmatpush.msra.mxu0 0.0
        %449 = vmatpush.msra.mxu0 %v432
        %450 = vmatpush.msra.mxu0 %v431
        %451 = vmatpush.msra.mxu0 %v430
        %452 = vmatpush.msra.mxu0 %v429
        %453 = vmatmul.f32.gmra.mxu0 %v401
        %v454 = vpop.f32.mrf.mxu0
        %v455 = vadd.f32 %v435, %v454
        %456 = vmatmul.f32.gmra.mxu0 %v404
        %v457 = vpop.f32.mrf.mxu0
        %v458 = vadd.f32 %v435, %v457
        %459 = vdwg.mxu0
        %v460 = vld [vmem:[%s0] sm:$0xff]
        %v461 = vld [vmem:[%s0 + $0x8] sm:$0xff]
        %v462 = vld [vmem:[%s0 + $0x10] sm:$0xff]
        %v463 = vld [vmem:[%s0 + $0x18] sm:$0xff]
        %v464 = vld [vmem:[%s0 + $0x20] sm:$0xff]
        %v465 = vld [vmem:[%s0 + $0x28] sm:$0xff]
        %v466 = vld [vmem:[%s0 + $0x30] sm:$0xff]
        %v467 = vld [vmem:[%s0 + $0x38] sm:$0xff]
        %v469 = vsel %vm399, %v424, 0
        %v472 = vsel %vm399, %v427, 0
        %v475 = vsel %vm399, %v460, 0
        %v478 = vsel %vm399, %v461, 0
        %v481 = vsel %vm399, %v462, 0
        %v484 = vsel %vm399, %v463, 0
        %v487 = vsel %vm399, %v464, 0
        %v490 = vsel %vm399, %v465, 0
        %v493 = vsel %vm399, %v466, 0
        %v496 = vsel %vm399, %v467, 0
        %498 = vmatpush.xpose.msra.mxu0 0.0
        %499 = vmatpush.xpose.msra.mxu0 0.0
        %500 = vmatpush.xpose.msra.mxu0 0.0
        %501 = vmatpush.xpose.msra.mxu0 0.0
        %502 = vmatpush.xpose.msra.mxu0 0.0
        %503 = vmatpush.xpose.msra.mxu0 0.0
        %504 = vmatpush.xpose.msra.mxu0 0.0
        %505 = vmatpush.xpose.msra.mxu0 0.0
        %506 = vmatpush.xpose.msra.mxu0 %v496
        %507 = vmatpush.xpose.msra.mxu0 %v493
        %508 = vmatpush.xpose.msra.mxu0 %v490
        %509 = vmatpush.xpose.msra.mxu0 %v487
        %510 = vmatpush.xpose.msra.mxu0 %v484
        %511 = vmatpush.xpose.msra.mxu0 %v481
        %512 = vmatpush.xpose.msra.mxu0 %v478
        %513 = vmatpush.xpose.msra.mxu0 %v475
        %514 = vmatmul.f32.gmra.mxu0 %v469
        %v515 = vpop.f32.mrf.mxu0
        %v516 = vadd.f32 0.0, %v515
        %517 = vmatmul.f32.gmra.mxu0 %v472
        %v518 = vpop.f32.mrf.mxu0
        %v519 = vadd.f32 0.0, %v518
        %520 = vdwg.mxu0
        %521 = vxpose.xlu0.b32.start [1/16] %v516, 128
        %522 = vxpose.xlu0.b32.cont [2/16] %v519, 128
        %523 = vxpose.xlu0.b32.cont [3/16] 0.0, 128
        %524 = vxpose.xlu0.b32.cont [4/16] 0.0, 128
        %525 = vxpose.xlu0.b32.cont [5/16] 0.0, 128
        %526 = vxpose.xlu0.b32.cont [6/16] 0.0, 128
        %527 = vxpose.xlu0.b32.cont [7/16] 0.0, 128
        %528 = vxpose.xlu0.b32.cont [8/16] 0.0, 128
        %529 = vxpose.xlu0.b32.cont [9/16] 0.0, 128
        %530 = vxpose.xlu0.b32.cont [10/16] 0.0, 128
        %531 = vxpose.xlu0.b32.cont [11/16] 0.0, 128
        %532 = vxpose.xlu0.b32.cont [12/16] 0.0, 128
        %533 = vxpose.xlu0.b32.cont [13/16] 0.0, 128
        %534 = vxpose.xlu0.b32.cont [14/16] 0.0, 128
        %535 = vxpose.xlu0.b32.cont [15/16] 0.0, 128
        %536 = vxpose.xlu0.b32.end [16/16] 0.0, 128
        %v537 = vpop.trf.xlu0
        %v538 = vpop.trf.xlu0
        %v539 = vpop.trf.xlu0
        %v540 = vpop.trf.xlu0
        %v541 = vpop.trf.xlu0
        %v542 = vpop.trf.xlu0
        %v543 = vpop.trf.xlu0
        %v544 = vpop.trf.xlu0
        %v545 = vpop.trf.xlu0
        %v546 = vpop.trf.xlu0
        %v547 = vpop.trf.xlu0
        %v548 = vpop.trf.xlu0
        %v549 = vpop.trf.xlu0
        %v550 = vpop.trf.xlu0
        %v551 = vpop.trf.xlu0
        %v552 = vpop.trf.xlu0
        %v553 = vld [vmem:[#allocation2] sm:$0xff]
        %v554 = vld [vmem:[#allocation2 + $0x8] sm:$0xff]
        %v555 = vld [vmem:[#allocation2 + $0x10] sm:$0xff]
        %v556 = vld [vmem:[#allocation2 + $0x18] sm:$0xff]
        %v557 = vld [vmem:[#allocation2 + $0x20] sm:$0xff]
        %v558 = vld [vmem:[#allocation2 + $0x28] sm:$0xff]
        %v559 = vld [vmem:[#allocation2 + $0x30] sm:$0xff]
        %v560 = vld [vmem:[#allocation2 + $0x38] sm:$0xff]
        %vm561 = vcmask 130048
        %v562 = vsel %vm561, %v537, -inf
        %563 = vmax.xlane.f32.xlu0 %v562
        %v564 = vpop.xlane.xlu0 %563
        %v565 = vsel %vm561, %v538, -inf
        %566 = vmax.xlane.f32.xlu0 %v565
        %v567 = vpop.xlane.xlu0 %566
        %v568 = vsel %vm561, %v539, -inf
        %569 = vmax.xlane.f32.xlu0 %v568
        %v570 = vpop.xlane.xlu0 %569
        %v571 = vsel %vm561, %v540, -inf
        %572 = vmax.xlane.f32.xlu0 %v571
        %v573 = vpop.xlane.xlu0 %572
        %v574 = vsel %vm561, %v541, -inf
        %575 = vmax.xlane.f32.xlu0 %v574
        %v576 = vpop.xlane.xlu0 %575
        %v577 = vsel %vm561, %v542, -inf
        %578 = vmax.xlane.f32.xlu0 %v577
        %v579 = vpop.xlane.xlu0 %578
        %v580 = vsel %vm561, %v543, -inf
        %581 = vmax.xlane.f32.xlu0 %v580
        %v582 = vpop.xlane.xlu0 %581
        %v583 = vsel %vm561, %v544, -inf
        %584 = vmax.xlane.f32.xlu0 %v583
        %v585 = vpop.xlane.xlu0 %584
        %v586 = vmax.f32 %v553, %v564
        %v587 = vmax.f32 %v554, %v567
        %v588 = vmax.f32 %v555, %v570
        %v589 = vmax.f32 %v556, %v573
        %v590 = vmax.f32 %v557, %v576
        %v591 = vmax.f32 %v558, %v579
        %v592 = vmax.f32 %v559, %v582
        %v593 = vmax.f32 %v560, %v585
        %v594 = vsub.f32 %v553, %v586
        %v595 = vsub.f32 %v554, %v587
        %v596 = vsub.f32 %v555, %v588
        %v597 = vsub.f32 %v556, %v589
        %v598 = vsub.f32 %v557, %v590
        %v599 = vsub.f32 %v558, %v591
        %v600 = vsub.f32 %v559, %v592
        %v601 = vsub.f32 %v560, %v593
        %v602 = vmul.f32 %v594, 1.442695
        %v603 = vpow.pop %v602
        %v604 = vmul.f32 %v595, 1.442695
        %v605 = vpow.pop %v604
        %v606 = vmul.f32 %v596, 1.442695
        %v607 = vpow.pop %v606
        %v608 = vmul.f32 %v597, 1.442695
        %v609 = vpow.pop %v608
        %v610 = vmul.f32 %v598, 1.442695
        %v611 = vpow.pop %v610
        %v612 = vmul.f32 %v599, 1.442695
        %v613 = vpow.pop %v612
        %v614 = vmul.f32 %v600, 1.442695
        %v615 = vpow.pop %v614
        %v616 = vmul.f32 %v601, 1.442695
        %v617 = vpow.pop %v616
        %619 = vset.pattern.permute.xlu0 0
        %620 = vperm.xlu0 %619, %v586
        %v621 = vpop.permute.xlu0 %620
        %624 = vset.pattern.permute.xlu0 0
        %625 = vperm.xlu0 %624, %v587
        %v626 = vpop.permute.xlu0 %625
        %629 = vset.pattern.permute.xlu0 0
        %630 = vperm.xlu0 %629, %v588
        %v631 = vpop.permute.xlu0 %630
        %634 = vset.pattern.permute.xlu0 0
        %635 = vperm.xlu0 %634, %v589
        %v636 = vpop.permute.xlu0 %635
        %639 = vset.pattern.permute.xlu0 0
        %640 = vperm.xlu0 %639, %v590
        %v641 = vpop.permute.xlu0 %640
        %644 = vset.pattern.permute.xlu0 0
        %645 = vperm.xlu0 %644, %v591
        %v646 = vpop.permute.xlu0 %645
        %649 = vset.pattern.permute.xlu0 0
        %650 = vperm.xlu0 %649, %v592
        %v651 = vpop.permute.xlu0 %650
        %654 = vset.pattern.permute.xlu0 0
        %655 = vperm.xlu0 %654, %v593
        %v656 = vpop.permute.xlu0 %655
        %v658 = vsub.f32 %v537, %v621
        %v659 = vsub.f32 %v538, %v626
        %v660 = vsub.f32 %v539, %v631
        %v661 = vsub.f32 %v540, %v636
        %v662 = vsub.f32 %v541, %v641
        %v663 = vsub.f32 %v542, %v646
        %v664 = vsub.f32 %v543, %v651
        %v665 = vsub.f32 %v544, %v656
        %v666 = vmul.f32 %v658, 1.442695
        %v667 = vpow.pop %v666
        %v668 = vmul.f32 %v659, 1.442695
        %v669 = vpow.pop %v668
        %v670 = vmul.f32 %v660, 1.442695
        %v671 = vpow.pop %v670
        %v672 = vmul.f32 %v661, 1.442695
        %v673 = vpow.pop %v672
        %v674 = vmul.f32 %v662, 1.442695
        %v675 = vpow.pop %v674
        %v676 = vmul.f32 %v663, 1.442695
        %v677 = vpow.pop %v676
        %v678 = vmul.f32 %v664, 1.442695
        %v679 = vpow.pop %v678
        %v680 = vmul.f32 %v665, 1.442695
        %v681 = vpow.pop %v680
        %v682 = vld [vmem:[#allocation3] sm:$0xff]
        %v683 = vld [vmem:[#allocation3 + $0x8] sm:$0xff]
        %v684 = vld [vmem:[#allocation3 + $0x10] sm:$0xff]
        %v685 = vld [vmem:[#allocation3 + $0x18] sm:$0xff]
        %v686 = vld [vmem:[#allocation3 + $0x20] sm:$0xff]
        %v687 = vld [vmem:[#allocation3 + $0x28] sm:$0xff]
        %v688 = vld [vmem:[#allocation3 + $0x30] sm:$0xff]
        %v689 = vld [vmem:[#allocation3 + $0x38] sm:$0xff]
        %v690 = vmul.f32 %v603, %v682
        %v691 = vmul.f32 %v605, %v683
        %v692 = vmul.f32 %v607, %v684
        %v693 = vmul.f32 %v609, %v685
        %v694 = vmul.f32 %v611, %v686
        %v695 = vmul.f32 %v613, %v687
        %v696 = vmul.f32 %v615, %v688
        %v697 = vmul.f32 %v617, %v689
        %v698 = vsel %vm561, %v667, 0.0
        %699 = vadd.xlane.f32.xlu0 %v698
        %v700 = vpop.xlane.xlu0 %699
        %v701 = vsel %vm561, %v669, 0.0
        %702 = vadd.xlane.f32.xlu0 %v701
        %v703 = vpop.xlane.xlu0 %702
        %v704 = vsel %vm561, %v671, 0.0
        %705 = vadd.xlane.f32.xlu0 %v704
        %v706 = vpop.xlane.xlu0 %705
        %v707 = vsel %vm561, %v673, 0.0
        %708 = vadd.xlane.f32.xlu0 %v707
        %v709 = vpop.xlane.xlu0 %708
        %v710 = vsel %vm561, %v675, 0.0
        %711 = vadd.xlane.f32.xlu0 %v710
        %v712 = vpop.xlane.xlu0 %711
        %v713 = vsel %vm561, %v677, 0.0
        %714 = vadd.xlane.f32.xlu0 %v713
        %v715 = vpop.xlane.xlu0 %714
        %v716 = vsel %vm561, %v679, 0.0
        %717 = vadd.xlane.f32.xlu0 %v716
        %v718 = vpop.xlane.xlu0 %717
        %v719 = vsel %vm561, %v681, 0.0
        %720 = vadd.xlane.f32.xlu0 %v719
        %v721 = vpop.xlane.xlu0 %720
        %v722 = vadd.f32 %v690, %v700
        %v723 = vadd.f32 %v691, %v703
        %v724 = vadd.f32 %v692, %v706
        %v725 = vadd.f32 %v693, %v709
        %v726 = vadd.f32 %v694, %v712
        %v727 = vadd.f32 %v695, %v715
        %v728 = vadd.f32 %v696, %v718
        %v729 = vadd.f32 %v697, %v721
        %vm730 = vcmask 7168
        %731 = vst.msk [vmem:[#allocation3] sm:$0xff] %vm730, %v722
        %732 = vst.msk [vmem:[#allocation3 + $0x8] sm:$0xff] %vm730, %v723
        %733 = vst.msk [vmem:[#allocation3 + $0x10] sm:$0xff] %vm730, %v724
        %734 = vst.msk [vmem:[#allocation3 + $0x18] sm:$0xff] %vm730, %v725
        %735 = vst.msk [vmem:[#allocation3 + $0x20] sm:$0xff] %vm730, %v726
        %736 = vst.msk [vmem:[#allocation3 + $0x28] sm:$0xff] %vm730, %v727
        %737 = vst.msk [vmem:[#allocation3 + $0x30] sm:$0xff] %vm730, %v728
        %738 = vst.msk [vmem:[#allocation3 + $0x38] sm:$0xff] %vm730, %v729
        %v739 = vld [vmem:[#allocation4] sm:$0xff]
        %v740 = vld [vmem:[#allocation4 + $0x8] sm:$0xff]
        %v741 = vld [vmem:[#allocation4 + $0x10] sm:$0xff]
        %v742 = vld [vmem:[#allocation4 + $0x18] sm:$0xff]
        %v743 = vld [vmem:[#allocation4 + $0x20] sm:$0xff]
        %v744 = vld [vmem:[#allocation4 + $0x28] sm:$0xff]
        %v745 = vld [vmem:[#allocation4 + $0x30] sm:$0xff]
        %v746 = vld [vmem:[#allocation4 + $0x38] sm:$0xff]
        %748 = vset.pattern.permute.xlu0 0
        %749 = vperm.xlu0 %748, %v603
        %v750 = vpop.permute.xlu0 %749
        %753 = vset.pattern.permute.xlu0 0
        %754 = vperm.xlu0 %753, %v605
        %v755 = vpop.permute.xlu0 %754
        %758 = vset.pattern.permute.xlu0 0
        %759 = vperm.xlu0 %758, %v607
        %v760 = vpop.permute.xlu0 %759
        %763 = vset.pattern.permute.xlu0 0
        %764 = vperm.xlu0 %763, %v609
        %v765 = vpop.permute.xlu0 %764
        %768 = vset.pattern.permute.xlu0 0
        %769 = vperm.xlu0 %768, %v611
        %v770 = vpop.permute.xlu0 %769
        %773 = vset.pattern.permute.xlu0 0
        %774 = vperm.xlu0 %773, %v613
        %v775 = vpop.permute.xlu0 %774
        %778 = vset.pattern.permute.xlu0 0
        %779 = vperm.xlu0 %778, %v615
        %v780 = vpop.permute.xlu0 %779
        %783 = vset.pattern.permute.xlu0 0
        %784 = vperm.xlu0 %783, %v617
        %v785 = vpop.permute.xlu0 %784
        %v787 = vmul.f32 %v750, %v739
        %v788 = vmul.f32 %v755, %v740
        %v789 = vmul.f32 %v760, %v741
        %v790 = vmul.f32 %v765, %v742
        %v791 = vmul.f32 %v770, %v743
        %v792 = vmul.f32 %v775, %v744
        %v793 = vmul.f32 %v780, %v745
        %v794 = vmul.f32 %v785, %v746
        %v796 = vsel %vm561, %v667, 0
        %v799 = vsel %vm561, %v669, 0
        %v802 = vsel %vm561, %v671, 0
        %v805 = vsel %vm561, %v673, 0
        %v808 = vsel %vm561, %v675, 0
        %v811 = vsel %vm561, %v677, 0
        %v814 = vsel %vm561, %v679, 0
        %v817 = vsel %vm561, %v681, 0
        %819 = vmatpush.msra.mxu0 0.0
        %820 = vmatpush.msra.mxu0 0.0
        %821 = vmatpush.msra.mxu0 0.0
        %822 = vmatpush.msra.mxu0 0.0
        %823 = vmatpush.msra.mxu0 0.0
        %824 = vmatpush.msra.mxu0 0.0
        %825 = vmatpush.msra.mxu0 0.0
        %826 = vmatpush.msra.mxu0 0.0
        %827 = vmatpush.msra.mxu0 0.0
        %828 = vmatpush.msra.mxu0 0.0
        %829 = vmatpush.msra.mxu0 0.0
        %830 = vmatpush.msra.mxu0 0.0
        %831 = vmatpush.msra.mxu0 0.0
        %832 = vmatpush.msra.mxu0 0.0
        %833 = vmatpush.msra.mxu0 %v458
        %834 = vmatpush.msra.mxu0 %v455
        %835 = vmatmul.f32.gmra.mxu0 %v796
        %v836 = vpop.f32.mrf.mxu0
        %v837 = vadd.f32 0.0, %v836
        %838 = vmatmul.f32.gmra.mxu0 %v799
        %v839 = vpop.f32.mrf.mxu0
        %v840 = vadd.f32 0.0, %v839
        %841 = vmatmul.f32.gmra.mxu0 %v802
        %v842 = vpop.f32.mrf.mxu0
        %v843 = vadd.f32 0.0, %v842
        %844 = vmatmul.f32.gmra.mxu0 %v805
        %v845 = vpop.f32.mrf.mxu0
        %v846 = vadd.f32 0.0, %v845
        %847 = vmatmul.f32.gmra.mxu0 %v808
        %v848 = vpop.f32.mrf.mxu0
        %v849 = vadd.f32 0.0, %v848
        %850 = vmatmul.f32.gmra.mxu0 %v811
        %v851 = vpop.f32.mrf.mxu0
        %v852 = vadd.f32 0.0, %v851
        %853 = vmatmul.f32.gmra.mxu0 %v814
        %v854 = vpop.f32.mrf.mxu0
        %v855 = vadd.f32 0.0, %v854
        %856 = vmatmul.f32.gmra.mxu0 %v817
        %v857 = vpop.f32.mrf.mxu0
        %v858 = vadd.f32 0.0, %v857
        %859 = vdwg.mxu0
        %v860 = vadd.f32 %v787, %v837
        %v861 = vadd.f32 %v788, %v840
        %v862 = vadd.f32 %v789, %v843
        %v863 = vadd.f32 %v790, %v846
        %v864 = vadd.f32 %v791, %v849
        %v865 = vadd.f32 %v792, %v852
        %v866 = vadd.f32 %v793, %v855
        %v867 = vadd.f32 %v794, %v858
        %868 = vst.msk [vmem:[#allocation4] sm:$0xff] %vm399, %v860
        %869 = vst.msk [vmem:[#allocation4 + $0x8] sm:$0xff] %vm399, %v861
        %870 = vst.msk [vmem:[#allocation4 + $0x10] sm:$0xff] %vm399, %v862
        %871 = vst.msk [vmem:[#allocation4 + $0x18] sm:$0xff] %vm399, %v863
        %872 = vst.msk [vmem:[#allocation4 + $0x20] sm:$0xff] %vm399, %v864
        %873 = vst.msk [vmem:[#allocation4 + $0x28] sm:$0xff] %vm399, %v865
        %874 = vst.msk [vmem:[#allocation4 + $0x30] sm:$0xff] %vm399, %v866
        %875 = vst.msk [vmem:[#allocation4 + $0x38] sm:$0xff] %vm399, %v867
        %876 = vst.msk [vmem:[#allocation2] sm:$0xff] %vm730, %v586
        %877 = vst.msk [vmem:[#allocation2 + $0x8] sm:$0xff] %vm730, %v587
        %878 = vst.msk [vmem:[#allocation2 + $0x10] sm:$0xff] %vm730, %v588
        %879 = vst.msk [vmem:[#allocation2 + $0x18] sm:$0xff] %vm730, %v589
        %880 = vst.msk [vmem:[#allocation2 + $0x20] sm:$0xff] %vm730, %v590
        %881 = vst.msk [vmem:[#allocation2 + $0x28] sm:$0xff] %vm730, %v591
        %882 = vst.msk [vmem:[#allocation2 + $0x30] sm:$0xff] %vm730, %v592
        %883 = vst.msk [vmem:[#allocation2 + $0x38] sm:$0xff] %vm730, %v593
        // Predicated region
        $region61: #{tpu_custom_call.1} parent=55 // pred_check
          %p884 = pneg %p359
        $region62: #{tpu_custom_call.1} parent=55 // pred_check_branch
          %886 = sbr.rel (%p884) target = $region64
        $region63: #{tpu_custom_call.1} parent=55 // pred_region
          %v887 = vld [vmem:[#allocation4] sm:$0xff]
          %v888 = vld [vmem:[#allocation4 + $0x8] sm:$0xff]
          %v889 = vld [vmem:[#allocation4 + $0x10] sm:$0xff]
          %v890 = vld [vmem:[#allocation4 + $0x18] sm:$0xff]
          %v891 = vld [vmem:[#allocation4 + $0x20] sm:$0xff]
          %v892 = vld [vmem:[#allocation4 + $0x28] sm:$0xff]
          %v893 = vld [vmem:[#allocation4 + $0x30] sm:$0xff]
          %v894 = vld [vmem:[#allocation4 + $0x38] sm:$0xff]
          %v895 = vld [vmem:[#allocation3] sm:$0xff]
          %v896 = vld [vmem:[#allocation3 + $0x8] sm:$0xff]
          %v897 = vld [vmem:[#allocation3 + $0x10] sm:$0xff]
          %v898 = vld [vmem:[#allocation3 + $0x18] sm:$0xff]
          %v899 = vld [vmem:[#allocation3 + $0x20] sm:$0xff]
          %v900 = vld [vmem:[#allocation3 + $0x28] sm:$0xff]
          %v901 = vld [vmem:[#allocation3 + $0x30] sm:$0xff]
          %v902 = vld [vmem:[#allocation3 + $0x38] sm:$0xff]
          %v903 = vrcp.pop %v895
          %v904 = vrcp.pop %v896
          %v905 = vrcp.pop %v897
          %v906 = vrcp.pop %v898
          %v907 = vrcp.pop %v899
          %v908 = vrcp.pop %v900
          %v909 = vrcp.pop %v901
          %v910 = vrcp.pop %v902
          %912 = vset.pattern.permute.xlu0 0
          %913 = vperm.xlu0 %912, %v903
          %v914 = vpop.permute.xlu0 %913
          %917 = vset.pattern.permute.xlu0 0
          %918 = vperm.xlu0 %917, %v904
          %v919 = vpop.permute.xlu0 %918
          %922 = vset.pattern.permute.xlu0 0
          %923 = vperm.xlu0 %922, %v905
          %v924 = vpop.permute.xlu0 %923
          %927 = vset.pattern.permute.xlu0 0
          %928 = vperm.xlu0 %927, %v906
          %v929 = vpop.permute.xlu0 %928
          %932 = vset.pattern.permute.xlu0 0
          %933 = vperm.xlu0 %932, %v907
          %v934 = vpop.permute.xlu0 %933
          %937 = vset.pattern.permute.xlu0 0
          %938 = vperm.xlu0 %937, %v908
          %v939 = vpop.permute.xlu0 %938
          %942 = vset.pattern.permute.xlu0 0
          %943 = vperm.xlu0 %942, %v909
          %v944 = vpop.permute.xlu0 %943
          %947 = vset.pattern.permute.xlu0 0
          %948 = vperm.xlu0 %947, %v910
          %v949 = vpop.permute.xlu0 %948
          %v951 = vmul.f32 %v887, %v914
          %v952 = vmul.f32 %v888, %v919
          %v953 = vmul.f32 %v889, %v924
          %v954 = vmul.f32 %v890, %v929
          %v955 = vmul.f32 %v891, %v934
          %v956 = vmul.f32 %v892, %v939
          %v957 = vmul.f32 %v893, %v944
          %v958 = vmul.f32 %v894, %v949
          %v959 = vld [vmem:[%s1] sm:$0xff]
          %v960 = vld [vmem:[%s1 + $0x8] sm:$0xff]
          %v961 = vld [vmem:[%s1 + $0x10] sm:$0xff]
          %v962 = vld [vmem:[%s1 + $0x18] sm:$0xff]
          %v963 = vld [vmem:[%s1 + $0x20] sm:$0xff]
          %v964 = vld [vmem:[%s1 + $0x28] sm:$0xff]
          %v965 = vld [vmem:[%s1 + $0x30] sm:$0xff]
          %v966 = vld [vmem:[%s1 + $0x38] sm:$0xff]
          %v967 = vmul.f32 %v951, %v959
          %v968 = vmul.f32 %v952, %v960
          %v969 = vmul.f32 %v953, %v961
          %v970 = vmul.f32 %v954, %v962
          %v971 = vmul.f32 %v955, %v963
          %v972 = vmul.f32 %v956, %v964
          %v973 = vmul.f32 %v957, %v965
          %v974 = vmul.f32 %v958, %v966
          %v975 = vsel %vm399, %v967, 0.0
          %v976 = vsel %vm399, %v968, 0.0
          %v977 = vadd.f32 %v975, %v976
          %v978 = vsel %vm399, %v969, 0.0
          %v979 = vadd.f32 %v977, %v978
          %v980 = vsel %vm399, %v970, 0.0
          %v981 = vadd.f32 %v979, %v980
          %v982 = vsel %vm399, %v971, 0.0
          %v983 = vadd.f32 %v981, %v982
          %v984 = vsel %vm399, %v972, 0.0
          %v985 = vadd.f32 %v983, %v984
          %v986 = vsel %vm399, %v973, 0.0
          %v987 = vadd.f32 %v985, %v986
          %v988 = vsel %vm399, %v974, 0.0
          %v989 = vadd.f32 %v987, %v988
          %v990 = vld [vmem:[%s5] sm:$0xff]
          %v991 = vld [vmem:[%s5 + $0x8] sm:$0xff]
          %v992 = vld [vmem:[%s5 + $0x10] sm:$0xff]
          %v993 = vld [vmem:[%s5 + $0x18] sm:$0xff]
          %v994 = vld [vmem:[%s8] sm:$0x1]
          %v996 = vperm.slane %v994, 0
          %v999 = vsel %vm399, %v989, 0
          %1001 = vmatpush.msra.mxu0 0.0
          %1002 = vmatpush.msra.mxu0 0.0
          %1003 = vmatpush.msra.mxu0 0.0
          %1004 = vmatpush.msra.mxu0 0.0
          %1005 = vmatpush.msra.mxu0 0.0
          %1006 = vmatpush.msra.mxu0 0.0
          %1007 = vmatpush.msra.mxu0 0.0
          %1008 = vmatpush.msra.mxu0 0.0
          %1009 = vmatpush.msra.mxu0 0.0
          %1010 = vmatpush.msra.mxu0 0.0
          %1011 = vmatpush.msra.mxu0 0.0
          %1012 = vmatpush.msra.mxu0 0.0
          %1013 = vmatpush.msra.mxu0 %v993
          %1014 = vmatpush.msra.mxu0 %v992
          %1015 = vmatpush.msra.mxu0 %v991
          %1016 = vmatpush.msra.mxu0 %v990
          %1017 = vmatmul.f32.gmra.mxu0 %v999
          %v1018 = vpop.f32.mrf.mxu0
          %v1019 = vadd.f32 %v996, %v1018
          %1020 = vdwg.mxu0
          %1021 = vst.msk [vmem:[%s348] sm:$0xff] %vm399, %v1019
        $region64: #{tpu_custom_call.1} parent=55 // pred_fallthru
          _
        %s1022 = sand.u32 %s239, 1
        %s1023 = scalar_lea.sflag [#allocation6], %s1022
        %s1024 = sand.u32 %s239, 1
        %s1025 = smul.addr %s1024, 8
        %s1026 = scalar_lea.vmem [#allocation5], %s1025
        // Predicated region
        $region65: #{tpu_custom_call.1} parent=55 // pred_check
          %p1027 = pneg %p249
        $region66: #{tpu_custom_call.1} parent=55 // pred_check_branch
          %1029 = sbr.rel (%p1027) target = $region68
        $region67: #{tpu_custom_call.1} parent=55 // pred_region
          %1031 = vsyncadd %s1023, 0
          %s1032 = smul.addr %s27, 8
          %s1033 = scalar_lea.hbm %s9, %s1032
          %s1035 = sshll.u32 %s1026, 4
          %s1036 = int_to_ptr.vmem [resolvable:$true] %s1035
          %s1037 = sshll.u32 %s1033, 4
          %s1038 = int_to_ptr.hbm [resolvable:$true] %s1037
          %1040 = dma.vmem_to_hbm [thread:$0]  %s1036, 128, %s1038, %s1023
        $region68: #{tpu_custom_call.1} parent=55 // pred_fallthru
          _
      $region56: #{tpu_custom_call.1} parent=5 // pred_fallthru
        _
      %p1041 = scmp.le.s32.totalorder 2, %s18
      // Predicated region
      $region69: #{tpu_custom_call.1} parent=5 // pred_check
        %p1042 = pneg %p1041
      $region70: #{tpu_custom_call.1} parent=5 // pred_check_branch
        %1044 = sbr.rel (%p1042) target = $region72
      $region71: #{tpu_custom_call.1} parent=5 // pred_region
        %s1045 = ssub.s32 %s18, 2
        // Predicated region
        $region73: #{tpu_custom_call.1} parent=71 // pred_check
          %p1046 = pneg %p255
        $region74: #{tpu_custom_call.1} parent=71 // pred_check_branch
          %1048 = sbr.rel (%p1046) target = $region76
        $region75: #{tpu_custom_call.1} parent=71 // pred_region
          %s1049 = sand.u32 %s240, 1
          %s1050 = scalar_lea.sflag [#allocation6], %s1049
          %s1051 = sand.u32 %s240, 1
          %s1052 = smul.addr %s1051, 8
          %s1053 = scalar_lea.vmem [#allocation5], %s1052
          %1055 = dma.done %s1050, 128
        $region76: #{tpu_custom_call.1} parent=71 // pred_fallthru
          _
      $region72: #{tpu_custom_call.1} parent=5 // pred_fallthru
        _
    $region6: #{tpu_custom_call.1} parent=1 // loop_footer
      %s22 = sadd.s32 1, %s18
    $region7: #{tpu_custom_call.1} parent=1 // loop_footer_branch
      %17 = sbr.rel target = $region3
    $region8: #{tpu_custom_call.1} parent=1 // loop_exit
      _
    %1056 = vsyncpa [#allocation6], 1
    %s1057 = scalar_lea.sflag [#allocation6], 1
    %1058 = vsyncpa %s1057, 1

</llo_original>
